<compile_context>
chip_gen: v6e
topology: v6e:2x2x1
jax: 0.10.0
libtpu: 0.0.40
codegen_flags: <defaults>
</compile_context>

<pallas_src>
import functools

import jax
import jax.numpy as jnp
from jax.experimental import pallas as pl
from jax.experimental.pallas import tpu as pltpu


def _bilinear_up2_matrix(n):
    """(2n, n) PyTorch bilinear x2 weights (align_corners=False, incl. edge clamping).
    Used only by the pure-JAX reference in __main__ to validate the 2-tap kernel."""
    dst = jnp.arange(2 * n, dtype=jnp.float32)
    src = jnp.maximum((dst + 0.5) / 2.0 - 0.5, 0.0)
    lo = jnp.floor(src)
    frac = src - lo
    lo_i = jnp.clip(lo.astype(jnp.int32), 0, n - 1)
    hi_i = jnp.clip(lo_i + 1, 0, n - 1)
    cols = jnp.arange(n)[None, :]
    return (jnp.where(cols == lo_i[:, None], 1.0 - frac[:, None], 0.0)
            + jnp.where(cols == hi_i[:, None], frac[:, None], 0.0)).astype(jnp.float32)


def _upsample_conv_kernel(x_ref, wt_ref, out_ref, *, H, W):
    # x_ref:   (H*W, Cin)       bf16  NHWC input, one sample (batch dim squeezed)
    # wt_ref:  (Cin, Tc)        bf16  1x1-conv weight tile (Tc output channels)
    # out_ref: (2, 2H, W, Tc)   f32   axis 0 = W-parity (even/odd output columns);
    #                                 the wrapper interleaves it during its NCHW transpose.
    # 1) 1x1 conv first: 4x fewer MACs than conv-after-upsample; bf16 MXU, f32 accumulate.
    y = jnp.dot(x_ref[...], wt_ref[...], preferred_element_type=jnp.float32)  # (H*W, Tc)
    y = y.reshape(H, W, -1)                                                   # (H, W, Tc)

    # 2) bilinear x2 along H (align_corners=False == exact 0.75/0.25 2-tap, edge-clamped).
    y_up = jnp.concatenate([y[:1], y[:-1]], axis=0)            # y[max(h-1, 0)]
    y_dn = jnp.concatenate([y[1:], y[-1:]], axis=0)            # y[min(h+1, H-1)]
    h_even = 0.75 * y + 0.25 * y_up                            # output rows 2h
    h_odd = 0.75 * y + 0.25 * y_dn                             # output rows 2h+1
    # interleave rows: merges the two OUTER dims only (lane/sublane layout untouched).
    z = jnp.stack([h_even, h_odd], axis=1).reshape(2 * H, W, -1)

    # 3) bilinear x2 along W, same 2-tap blend; even/odd columns written as two planes.
    z_lf = jnp.concatenate([z[:, :1], z[:, :-1]], axis=1)      # z[:, max(w-1, 0)]
    z_rt = jnp.concatenate([z[:, 1:], z[:, -1:]], axis=1)      # z[:, min(w+1, W-1)]
    out_ref[0] = (0.75 * z + 0.25 * z_lf).astype(out_ref.dtype)   # output cols 2w
    out_ref[1] = (0.75 * z + 0.25 * z_rt).astype(out_ref.dtype)   # output cols 2w+1


def upsample(x_nchw, w_conv, *, cout_tile=256):
    """x_nchw: (N, Cin, H, W) f32;  w_conv: (Cout, Cin, 1, 1) f32 (bias-free 1x1 conv).
    Returns (N, Cout, 2H, 2W) f32 — same semantics as the PyTorch UpSample module."""
    N, Cin, H, W = x_nchw.shape
    Cout = w_conv.shape[0]
    Ho, Wo = 2 * H, 2 * W

    # Output-channel (lane) tile: caps per-step VMEM on v7x and adds a second parallel
    # grid axis when Cout is large.  Demo Cout=8 -> single tile.
    tc = cout_tile if (Cout % cout_tile == 0) else Cout

    # NCHW -> NHWC, flattened spatial rows, bf16 operands for the MXU (f32 accumulate).
    x2 = jnp.transpose(x_nchw, (0, 2, 3, 1)).reshape(N, H * W, Cin).astype(jnp.bfloat16)
    wt = w_conv[:, :, 0, 0].T.astype(jnp.bfloat16)              # (Cin, Cout)

    flops = (2 * N * H * W * Cin * Cout        # 1x1 conv
             + 3 * N * Ho * W * Cout           # H-direction 2-tap blend
             + 3 * N * Ho * Wo * Cout)         # W-direction 2-tap blend
    bytes_accessed = x2.size * 2 + wt.size * 2 + N * Ho * Wo * Cout * 4

    out_k = pl.pallas_call(
        functools.partial(_upsample_conv_kernel, H=H, W=W),
        out_shape=jax.ShapeDtypeStruct((N, 2, Ho, W, Cout), jnp.float32),
        grid=(N, Cout // tc),
        in_specs=[
            pl.BlockSpec((pl.Squeezed(), H * W, Cin), lambda n, j: (n, 0, 0)),
            pl.BlockSpec((Cin, tc), lambda n, j: (0, j),
                         pipeline_mode=pl.Buffered(1)),   # constant-index weight tile
        ],
        out_specs=pl.BlockSpec((pl.Squeezed(), 2, Ho, W, tc),
                               lambda n, j: (n, 0, 0, 0, j)),
        compiler_params=pltpu.CompilerParams(
            dimension_semantics=("parallel", "parallel"),
            vmem_limit_bytes=32 * 1024 * 1024),
        cost_estimate=pl.CostEstimate(flops=flops, transcendentals=0,
                                      bytes_accessed=bytes_accessed),
    )(x2, wt)

    # (N, 2, 2H, W, Cout): fold the W even/odd interleave into the NHWC->NCHW transpose
    # we need anyway -> one XLA transpose over the output, no extra HBM pass.
    # TODO(synk): return the NHWC / lane-dense slab (and/or bf16 output) directly if the
    # consumer allows it; that removes this HBM-bound transpose entirely.
    return out_k.transpose(0, 4, 2, 3, 1).reshape(N, Cout, Ho, Wo)


if __name__ == "__main__":
    key = jax.random.PRNGKey(0)
    kx, kw = jax.random.split(key)

    N, Cin, H, W = 2, 4, 16, 16
    Cout = 8

    x = jax.random.normal(kx, (N, Cin, H, W), jnp.float32)
    w_conv = 0.1 * jax.random.normal(kw, (Cout, Cin, 1, 1), jnp.float32)

    out = jax.jit(upsample)(x, w_conv)
    jax.block_until_ready(out)

    assert out.shape == (N, Cout, 2 * H, 2 * W)
    assert bool(jnp.all(jnp.isfinite(out)))

    # Pure-JAX f32 reference of the module: bilinear x2 (align_corners=False) then 1x1 conv.
    uh = _bilinear_up2_matrix(H)
    uw = _bilinear_up2_matrix(W)
    x_nhwc = jnp.transpose(x, (0, 2, 3, 1))
    ref_up = jnp.einsum('ph,qw,nhwc->npqc', uh, uw, x_nhwc)
    ref = jnp.einsum('npqc,dc->ndpq', ref_up, w_conv[:, :, 0, 0])
    err = float(jnp.max(jnp.abs(out - ref)))
    assert err < 2e-2, f"max abs err {err}"
    print("KERNEL_OK")
</pallas_src>

<mosaic_0001>
module attributes {stable_mosaic.version = 11 : i64} {
  func.func @_upsample_conv_kernel(%arg0: i32, %arg1: i32, %arg2: memref<1x256x4xbf16, #tpu.memory_space<vmem>>, %arg3: memref<4x8xbf16, #tpu.memory_space<vmem>>, %arg4: memref<1x2x32x16x8xf32, #tpu.memory_space<vmem>>) attributes {dimension_semantics = [#tpu.dimension_semantics<parallel>, #tpu.dimension_semantics<parallel>], iteration_bounds = array<i64: 2, 1>, scalar_prefetch = 0 : i64, scratch_operands = 0 : i64, tpu.core_type = #tpu.core_type<tc>, window_params = [{transform_indices = @transform_0, window_bounds = array<i64: 1, 256, 4>}, {pipeline_mode = #tpu.pipeline_mode<synchronous>, transform_indices = @transform_1, window_bounds = array<i64: 4, 8>}, {transform_indices = @transform_2, window_bounds = array<i64: 1, 2, 32, 16, 8>}]} {
    %c0 = arith.constant 0 : index
    %c0_0 = arith.constant 0 : index
    %c0_1 = arith.constant 0 : index
    %0 = vector.load %arg2[%c0, %c0_0, %c0_1] : memref<1x256x4xbf16, #tpu.memory_space<vmem>>, vector<1x256x4xbf16>
    %1 = vector.shape_cast %0 : vector<1x256x4xbf16> to vector<256x4xbf16>
    %c0_2 = arith.constant 0 : index
    %c0_3 = arith.constant 0 : index
    %2 = vector.load %arg3[%c0_2, %c0_3] : memref<4x8xbf16, #tpu.memory_space<vmem>>, vector<4x8xbf16>
    %cst = arith.constant dense<0.000000e+00> : vector<256x8xf32>
    %3 = tpu.matmul %1, %2, %cst {dimension_numbers = #tpu.dot_dimension_numbers<[1], [0], [0], [1], [0, 0, 1, 1], [], []>} : vector<256x4xbf16>, vector<4x8xbf16>, vector<256x8xf32> -> vector<256x8xf32>
    %4 = vector.shape_cast %3 : vector<256x8xf32> to vector<16x16x8xf32>
    %5 = vector.extract_strided_slice %4 {offsets = [0, 0, 0], sizes = [1, 16, 8], strides = [1, 1, 1]} : vector<16x16x8xf32> to vector<1x16x8xf32>
    %6 = vector.extract_strided_slice %4 {offsets = [0, 0, 0], sizes = [15, 16, 8], strides = [1, 1, 1]} : vector<16x16x8xf32> to vector<15x16x8xf32>
    %7 = tpu.concatenate %5, %6 in 0 : vector<1x16x8xf32>, vector<15x16x8xf32> -> vector<16x16x8xf32>
    %8 = vector.extract_strided_slice %4 {offsets = [1, 0, 0], sizes = [15, 16, 8], strides = [1, 1, 1]} : vector<16x16x8xf32> to vector<15x16x8xf32>
    %9 = vector.extract_strided_slice %4 {offsets = [15, 0, 0], sizes = [1, 16, 8], strides = [1, 1, 1]} : vector<16x16x8xf32> to vector<1x16x8xf32>
    %10 = tpu.concatenate %8, %9 in 0 : vector<15x16x8xf32>, vector<1x16x8xf32> -> vector<16x16x8xf32>
    %cst_4 = arith.constant 7.500000e-01 : f32
    %11 = vector.broadcast %cst_4 : f32 to vector<16x16x8xf32>
    %12 = arith.mulf %11, %4 : vector<16x16x8xf32>
    %cst_5 = arith.constant 2.500000e-01 : f32
    %13 = vector.broadcast %cst_5 : f32 to vector<16x16x8xf32>
    %14 = arith.mulf %13, %7 : vector<16x16x8xf32>
    %15 = arith.addf %12, %14 : vector<16x16x8xf32>
    %cst_6 = arith.constant 7.500000e-01 : f32
    %16 = vector.broadcast %cst_6 : f32 to vector<16x16x8xf32>
    %17 = arith.mulf %16, %4 : vector<16x16x8xf32>
    %cst_7 = arith.constant 2.500000e-01 : f32
    %18 = vector.broadcast %cst_7 : f32 to vector<16x16x8xf32>
    %19 = arith.mulf %18, %10 : vector<16x16x8xf32>
    %20 = arith.addf %17, %19 : vector<16x16x8xf32>
    %21 = vector.shape_cast %15 : vector<16x16x8xf32> to vector<16x1x16x8xf32>
    %22 = vector.shape_cast %20 : vector<16x16x8xf32> to vector<16x1x16x8xf32>
    %23 = tpu.concatenate %21, %22 in 1 : vector<16x1x16x8xf32>, vector<16x1x16x8xf32> -> vector<16x2x16x8xf32>
    %24 = vector.shape_cast %23 : vector<16x2x16x8xf32> to vector<32x16x8xf32>
    %25 = vector.extract_strided_slice %24 {offsets = [0, 0, 0], sizes = [32, 1, 8], strides = [1, 1, 1]} : vector<32x16x8xf32> to vector<32x1x8xf32>
    %26 = vector.extract_strided_slice %24 {offsets = [0, 0, 0], sizes = [32, 15, 8], strides = [1, 1, 1]} : vector<32x16x8xf32> to vector<32x15x8xf32>
    %27 = tpu.concatenate %25, %26 in 1 : vector<32x1x8xf32>, vector<32x15x8xf32> -> vector<32x16x8xf32>
    %28 = vector.extract_strided_slice %24 {offsets = [0, 1, 0], sizes = [32, 15, 8], strides = [1, 1, 1]} : vector<32x16x8xf32> to vector<32x15x8xf32>
    %29 = vector.extract_strided_slice %24 {offsets = [0, 15, 0], sizes = [32, 1, 8], strides = [1, 1, 1]} : vector<32x16x8xf32> to vector<32x1x8xf32>
    %30 = tpu.concatenate %28, %29 in 1 : vector<32x15x8xf32>, vector<32x1x8xf32> -> vector<32x16x8xf32>
    %cst_8 = arith.constant 7.500000e-01 : f32
    %31 = vector.broadcast %cst_8 : f32 to vector<32x16x8xf32>
    %32 = arith.mulf %31, %24 : vector<32x16x8xf32>
    %cst_9 = arith.constant 2.500000e-01 : f32
    %33 = vector.broadcast %cst_9 : f32 to vector<32x16x8xf32>
    %34 = arith.mulf %33, %27 : vector<32x16x8xf32>
    %35 = arith.addf %32, %34 : vector<32x16x8xf32>
    %c0_10 = arith.constant 0 : index
    %c0_11 = arith.constant 0 : index
    %c0_12 = arith.constant 0 : index
    %c0_13 = arith.constant 0 : index
    %c0_14 = arith.constant 0 : index
    %36 = vector.load %arg4[%c0_10, %c0_11, %c0_12, %c0_13, %c0_14] : memref<1x2x32x16x8xf32, #tpu.memory_space<vmem>>, vector<1x1x32x16x8xf32>
    %37 = vector.shape_cast %36 : vector<1x1x32x16x8xf32> to vector<32x16x8xf32>
    %38 = vector.shape_cast %35 : vector<32x16x8xf32> to vector<1x1x32x16x8xf32>
    tpu.vector_store %arg4[%c0_10, %c0_11, %c0_12, %c0_13, %c0_14], %38 {strides = array<i32>} : memref<1x2x32x16x8xf32, #tpu.memory_space<vmem>>, vector<1x1x32x16x8xf32>,
    %cst_15 = arith.constant 7.500000e-01 : f32
    %39 = vector.broadcast %cst_15 : f32 to vector<32x16x8xf32>
    %40 = arith.mulf %39, %24 : vector<32x16x8xf32>
    %cst_16 = arith.constant 2.500000e-01 : f32
    %41 = vector.broadcast %cst_16 : f32 to vector<32x16x8xf32>
    %42 = arith.mulf %41, %30 : vector<32x16x8xf32>
    %43 = arith.addf %40, %42 : vector<32x16x8xf32>
    %c0_17 = arith.constant 0 : index
    %c1 = arith.constant 1 : index
    %c0_18 = arith.constant 0 : index
    %c0_19 = arith.constant 0 : index
    %c0_20 = arith.constant 0 : index
    %44 = vector.load %arg4[%c0_17, %c1, %c0_18, %c0_19, %c0_20] : memref<1x2x32x16x8xf32, #tpu.memory_space<vmem>>, vector<1x1x32x16x8xf32>
    %45 = vector.shape_cast %44 : vector<1x1x32x16x8xf32> to vector<32x16x8xf32>
    %46 = vector.shape_cast %43 : vector<32x16x8xf32> to vector<1x1x32x16x8xf32>
    tpu.vector_store %arg4[%c0_17, %c1, %c0_18, %c0_19, %c0_20], %46 {strides = array<i32>} : memref<1x2x32x16x8xf32, #tpu.memory_space<vmem>>, vector<1x1x32x16x8xf32>,
    return
  }
  func.func @transform_0(%arg0: i32, %arg1: i32) -> (i32, i32, i32) {
    %c0_i32 = arith.constant 0 : i32
    %c0_i32_0 = arith.constant 0 : i32
    %c0_i32_1 = arith.constant 0 : i32
    return %arg0, %c0_i32, %c0_i32_0 : i32, i32, i32
  }
  func.func @transform_1(%arg0: i32, %arg1: i32) -> (i32, i32) {
    %c0_i32 = arith.constant 0 : i32
    %c0_i32_0 = arith.constant 0 : i32
    return %c0_i32, %arg1 : i32, i32
  }
  func.func @transform_2(%arg0: i32, %arg1: i32) -> (i32, i32, i32, i32, i32) {
    %c0_i32 = arith.constant 0 : i32
    %c0_i32_0 = arith.constant 0 : i32
    %c0_i32_1 = arith.constant 0 : i32
    %c0_i32_2 = arith.constant 0 : i32
    return %arg0, %c0_i32, %c0_i32_0, %c0_i32_1, %arg1 : i32, i32, i32, i32, i32
  }
}

</mosaic_0001>

<llo_original>
// kernel: upsample.1
$region0: #{upsample.1}
  #allocation0 [shape = 'u32[]', space=smem, size = 0x4, offset = 0x4, fixed_abs, tag = 'smem constant byte address 0x4 - core index']
  #allocation1 [shape = 'u32[144,128]{1,0:T(1,128)}', space=vmem, size = 0x12000, scoped, tag = 'internal scratch']
  %s0 = inlined_call_operand.vmem [shape: bf16[2,256,4], index: 0, kind: input, shape index: {}]
  %s1 = inlined_call_operand.vmem [shape: bf16[4,8], index: 1, kind: input, shape index: {}]
  %s2 = inlined_call_operand.vmem [shape: f32[2,2,32,16,8], index: 2, kind: output, shape index: {}]
  %s3 = sld [smem:[#allocation0]]
  $region41: #{upsample.1} parent=0
    _
  %s5 = ssub.s32 1, %s3
  %s6 = scalar_select 0, %s5, %s3
  loop: start=0, step=1, limit=4
  $region2: #{upsample.1} parent=0 // loop_pre_header
    _
  $region3: #{upsample.1} parent=0 // loop_header
    %s8 = sphi 0, %s12
    %p9 = scmp.ge.s32.totalorder %s8, 4
    %s15 = sphi 0, %s27
    %s16 = sphi 0, %s23
    %s17 = sphi 0, %s15
    %s18 = sphi 0, %s16
    %s19 = sphi 0, %s17
    %s20 = sphi 0, %s18
    %s30 = sphi 0, %s32
    %s33 = sphi 0, %s30
    %s34 = sphi 0, %s33
    %s50 = sphi 0, %s34
    %s56 = sphi 0, %s58
    %s59 = sphi 0, %s56
    %s60 = sphi 0, %s59
    %s76 = sphi 0, %s60
    %s84 = sphi 0, %s86
    %s87 = sphi 0, %s84
    %s88 = sphi 0, %s87
    %s104 = sphi 0, %s88
  $region4: #{upsample.1} parent=0 // loop_header_branch
    %11 = sbr.rel (%p9) target = $region8
  $region5: #{upsample.1} parent=0 // loop_body
    %s13 = ssub.s32 %s8, 1
    %s14 = ssub.s32 %s8, 2
    %s21 = sadd.s32 1, %s16
    %p22 = scmp.ge.s32.totalorder %s21, 1
    %s23 = scalar_select %p22, 0, %s21
    %s24 = sadd.s32 1, %s15
    %s25 = scalar_select %p22, %s24, %s15
    %p26 = scmp.ge.s32.totalorder %s25, 2
    %s27 = scalar_select %p26, 0, %s25
    %s28 = ssub.s32 %s15, %s27
    %p29 = scmp.eq.s32.totalorder %s28, 0
    %s31 = sadd.s32 %s30, 1
    %s32 = scalar_select %p29, %s30, %s31
    %p35 = pneg %p29
    %p36 = scmp.eq.s32.totalorder %s8, 1
    %p37 = por %p35, %p36
    %p38 = scmp.ne.s32.totalorder %s30, %s33
    %p39 = scmp.eq.s32.totalorder %s8, 0
    %p40 = por %p38, %p39
    %p41 = scmp.ne.s32.totalorder %s30, %s33
    %p42 = scmp.eq.s32.totalorder %s13, 1
    %p43 = por %p41, %p42
    %p44 = scmp.ne.s32.totalorder %s33, %s34
    %p45 = scmp.eq.s32.totalorder %s13, 0
    %p46 = por %p44, %p45
    %p47 = scmp.ne.s32.totalorder %s33, %s34
    %p48 = scmp.eq.s32.totalorder %s14, 1
    %p49 = por %p47, %p48
    %p51 = scmp.ne.s32.totalorder %s34, %s50
    %p52 = scmp.eq.s32.totalorder %s14, 0
    %p53 = por %p51, %p52
    %s54 = ssub.s32 %s16, %s23
    %p55 = scmp.eq.s32.totalorder %s54, 0
    %s57 = sadd.s32 %s56, 1
    %s58 = scalar_select %p55, %s56, %s57
    %p61 = pneg %p55
    %p62 = scmp.eq.s32.totalorder %s8, 1
    %p63 = por %p61, %p62
    %p64 = scmp.ne.s32.totalorder %s56, %s59
    %p65 = scmp.eq.s32.totalorder %s8, 0
    %p66 = por %p64, %p65
    %p67 = scmp.ne.s32.totalorder %s56, %s59
    %p68 = scmp.eq.s32.totalorder %s13, 1
    %p69 = por %p67, %p68
    %p70 = scmp.ne.s32.totalorder %s59, %s60
    %p71 = scmp.eq.s32.totalorder %s13, 0
    %p72 = por %p70, %p71
    %p73 = scmp.ne.s32.totalorder %s59, %s60
    %p74 = scmp.eq.s32.totalorder %s14, 1
    %p75 = por %p73, %p74
    %p77 = scmp.ne.s32.totalorder %s60, %s76
    %p78 = scmp.eq.s32.totalorder %s14, 0
    %p79 = por %p77, %p78
    %s80 = ssub.s32 %s15, %s27
    %s81 = ssub.s32 %s16, %s23
    %s82 = sor.u32 %s80, %s81
    %p83 = scmp.eq.s32.totalorder %s82, 0
    %s85 = sadd.s32 %s84, 1
    %s86 = scalar_select %p83, %s84, %s85
    %p89 = pneg %p83
    %p90 = scmp.eq.s32.totalorder %s8, 1
    %p91 = por %p89, %p90
    %p92 = scmp.ne.s32.totalorder %s84, %s87
    %p93 = scmp.eq.s32.totalorder %s8, 0
    %p94 = por %p92, %p93
    %p95 = scmp.ne.s32.totalorder %s84, %s87
    %p96 = scmp.eq.s32.totalorder %s13, 1
    %p97 = por %p95, %p96
    %p98 = scmp.ne.s32.totalorder %s87, %s88
    %p99 = scmp.eq.s32.totalorder %s13, 0
    %p100 = por %p98, %p99
    %p101 = scmp.ne.s32.totalorder %s87, %s88
    %p102 = scmp.eq.s32.totalorder %s14, 1
    %p103 = por %p101, %p102
    %p105 = scmp.ne.s32.totalorder %s88, %s104
    %p106 = scmp.eq.s32.totalorder %s14, 0
    %p107 = por %p105, %p106
    %p108 = scmp.le.s32.totalorder 1, %s8
    %p109 = scmp.lt.s32.totalorder %s8, 3
    %p110 = pnand %p108, %p109
    %p111 = pneg %p110
    // Predicated region
    $region9: #{upsample.1} parent=5 // pred_check
      _
    $region10: #{upsample.1} parent=5 // pred_check_branch
      %113 = sbr.rel (%p110) target = $region12
    $region11: #{upsample.1} parent=5 // pred_region
      %s114 = ssub.s32 %s8, 1
      // Predicated region
      $region13: #{upsample.1} parent=11 // pred_check
        %p115 = pneg %p72
      $region14: #{upsample.1} parent=11 // pred_check_branch
        %117 = sbr.rel (%p115) target = $region16
      $region15: #{upsample.1} parent=11 // pred_region
        %p118 = scmp.lt.s32.totalorder %s18, 0
        %s119 = scalar_select %p118, %s18, 0
        %s120 = smul.addr %s119, 2
        %s121 = scalar_lea.vmem %s1, %s120
      $region16: #{upsample.1} parent=11 // pred_fallthru
        _
    $region12: #{upsample.1} parent=5 // pred_fallthru
      _
    %p122 = scmp.lt.s32.totalorder %s8, 2
    // Predicated region
    $region17: #{upsample.1} parent=5 // pred_check
      %p123 = pneg %p122
    $region18: #{upsample.1} parent=5 // pred_check_branch
      %125 = sbr.rel (%p123) target = $region20
    $region19: #{upsample.1} parent=5 // pred_region
      // Predicated region
      $region21: #{upsample.1} parent=19 // pred_check
        %p126 = pneg %p40
      $region22: #{upsample.1} parent=19 // pred_check_branch
        %128 = sbr.rel (%p126) target = $region24
      $region23: #{upsample.1} parent=19 // pred_region
        %p129 = scmp.lt.s32.totalorder %s15, 1
        %s130 = scalar_select %p129, %s15, 1
        %s131 = smul.addr %s130, 32
        %s132 = smul.addr %s131, 4
        %s133 = scalar_lea.vmem %s0, %s132
      $region24: #{upsample.1} parent=19 // pred_fallthru
        _
    $region20: #{upsample.1} parent=5 // pred_fallthru
      _
    %p134 = scmp.le.s32.totalorder 1, %s8
    %p135 = scmp.lt.s32.totalorder %s8, 3
    %p136 = pnand %p134, %p135
    %p137 = pneg %p136
    // Predicated region
    $region25: #{upsample.1} parent=5 // pred_check
      _
    $region26: #{upsample.1} parent=5 // pred_check_branch
      %139 = sbr.rel (%p136) target = $region28
    $region27: #{upsample.1} parent=5 // pred_region
      %s140 = ssub.s32 %s8, 1
      %p141 = scmp.lt.s32.totalorder %s17, 1
      %s142 = scalar_select %p141, %s17, 1
      %s143 = smul.addr %s142, 32
      %s144 = smul.addr %s143, 4
      %s145 = scalar_lea.vmem %s0, %s144
      %p146 = pneg %p46
      %p147 = pneg %p43
      %p148 = scmp.lt.s32.totalorder %s18, 0
      %s149 = scalar_select %p148, %s18, 0
      %s150 = smul.addr %s149, 2
      %s151 = scalar_lea.vmem %s1, %s150
      %p152 = pneg %p72
      %p153 = pneg %p69
      %p154 = pneg %p100
      %p155 = pneg %p97
      %p156 = scmp.lt.s32.totalorder %s17, 1
      %s157 = scalar_select %p156, %s17, 1
      %p158 = scmp.lt.s32.totalorder %s18, 0
      %s159 = scalar_select %p158, %s18, 0
      %s160 = smul.addr %s157, 128
      %s161 = sadd.s32 %s159, %s160
      %s162 = smul.addr %s161, 8
      %s163 = scalar_lea.vmem %s2, %s162
      %p164 = scmp.lt.s32.totalorder %s17, 1
      %s165 = scalar_select %p164, %s17, 1
      %s166 = smul.addr %s165, 32
      %s167 = smul.addr %s166, 4
      %s168 = scalar_lea.vmem %s0, %s167
      %p169 = scmp.lt.s32.totalorder %s18, 0
      %s170 = scalar_select %p169, %s18, 0
      %s171 = smul.addr %s170, 2
      %s172 = scalar_lea.vmem %s1, %s171
      %p173 = scmp.lt.s32.totalorder %s17, 1
      %s174 = scalar_select %p173, %s17, 1
      %p175 = scmp.lt.s32.totalorder %s18, 0
      %s176 = scalar_select %p175, %s18, 0
      %s177 = smul.addr %s174, 128
      %s178 = sadd.s32 %s176, %s177
      %s179 = smul.addr %s178, 8
      %s180 = scalar_lea.vmem %s2, %s179
      %v182 = vld [vmem:[%s168] sm:$0xf]
      %v183 = vld [vmem:[%s168 + $0x4] sm:$0xf]
      %v184 = vld [vmem:[%s168 + $0x8] sm:$0xf]
      %v185 = vld [vmem:[%s168 + $0xc] sm:$0xf]
      %v186 = vld [vmem:[%s168 + $0x10] sm:$0xf]
      %v187 = vld [vmem:[%s168 + $0x14] sm:$0xf]
      %v188 = vld [vmem:[%s168 + $0x18] sm:$0xf]
      %v189 = vld [vmem:[%s168 + $0x1c] sm:$0xf]
      %v190 = vld [vmem:[%s168 + $0x20] sm:$0xf]
      %v191 = vld [vmem:[%s168 + $0x24] sm:$0xf]
      %v192 = vld [vmem:[%s168 + $0x28] sm:$0xf]
      %v193 = vld [vmem:[%s168 + $0x2c] sm:$0xf]
      %v194 = vld [vmem:[%s168 + $0x30] sm:$0xf]
      %v195 = vld [vmem:[%s168 + $0x34] sm:$0xf]
      %v196 = vld [vmem:[%s168 + $0x38] sm:$0xf]
      %v197 = vld [vmem:[%s168 + $0x3c] sm:$0xf]
      %v198 = vld [vmem:[%s168 + $0x40] sm:$0xf]
      %v199 = vld [vmem:[%s168 + $0x44] sm:$0xf]
      %v200 = vld [vmem:[%s168 + $0x48] sm:$0xf]
      %v201 = vld [vmem:[%s168 + $0x4c] sm:$0xf]
      %v202 = vld [vmem:[%s168 + $0x50] sm:$0xf]
      %v203 = vld [vmem:[%s168 + $0x54] sm:$0xf]
      %v204 = vld [vmem:[%s168 + $0x58] sm:$0xf]
      %v205 = vld [vmem:[%s168 + $0x5c] sm:$0xf]
      %v206 = vld [vmem:[%s168 + $0x60] sm:$0xf]
      %v207 = vld [vmem:[%s168 + $0x64] sm:$0xf]
      %v208 = vld [vmem:[%s168 + $0x68] sm:$0xf]
      %v209 = vld [vmem:[%s168 + $0x6c] sm:$0xf]
      %v210 = vld [vmem:[%s168 + $0x70] sm:$0xf]
      %v211 = vld [vmem:[%s168 + $0x74] sm:$0xf]
      %v212 = vld [vmem:[%s168 + $0x78] sm:$0xf]
      %v213 = vld [vmem:[%s168 + $0x7c] sm:$0xf]
      %v214 = vld [vmem:[%s172] sm:$0x3]
      %v247 = vunpack.c.l.b16 %v182
      %v248 = vunpack.c.l.b16 %v183
      %v249 = vunpack.c.l.b16 %v184
      %v250 = vunpack.c.l.b16 %v185
      %v251 = vunpack.c.l.b16 %v186
      %v252 = vunpack.c.l.b16 %v187
      %v253 = vunpack.c.l.b16 %v188
      %v254 = vunpack.c.l.b16 %v189
      %v255 = vunpack.c.l.b16 %v190
      %v256 = vunpack.c.l.b16 %v191
      %v257 = vunpack.c.l.b16 %v192
      %v258 = vunpack.c.l.b16 %v193
      %v259 = vunpack.c.l.b16 %v194
      %v260 = vunpack.c.l.b16 %v195
      %v261 = vunpack.c.l.b16 %v196
      %v262 = vunpack.c.l.b16 %v197
      %v263 = vunpack.c.l.b16 %v198
      %v264 = vunpack.c.l.b16 %v199
      %v265 = vunpack.c.l.b16 %v200
      %v266 = vunpack.c.l.b16 %v201
      %v267 = vunpack.c.l.b16 %v202
      %v268 = vunpack.c.l.b16 %v203
      %v269 = vunpack.c.l.b16 %v204
      %v270 = vunpack.c.l.b16 %v205
      %v271 = vunpack.c.l.b16 %v206
      %v272 = vunpack.c.l.b16 %v207
      %v273 = vunpack.c.l.b16 %v208
      %v274 = vunpack.c.l.b16 %v209
      %v275 = vunpack.c.l.b16 %v210
      %v276 = vunpack.c.l.b16 %v211
      %v277 = vunpack.c.l.b16 %v212
      %v278 = vunpack.c.l.b16 %v213
      %v279 = vpack.c.b16 %v248, %v247
      %v280 = vpack.c.b16 %v250, %v249
      %v281 = vpack.c.b16 %v252, %v251
      %v282 = vpack.c.b16 %v254, %v253
      %v283 = vpack.c.b16 %v256, %v255
      %v284 = vpack.c.b16 %v258, %v257
      %v285 = vpack.c.b16 %v260, %v259
      %v286 = vpack.c.b16 %v262, %v261
      %v287 = vpack.c.b16 %v264, %v263
      %v288 = vpack.c.b16 %v266, %v265
      %v289 = vpack.c.b16 %v268, %v267
      %v290 = vpack.c.b16 %v270, %v269
      %v291 = vpack.c.b16 %v272, %v271
      %v292 = vpack.c.b16 %v274, %v273
      %v293 = vpack.c.b16 %v276, %v275
      %v294 = vpack.c.b16 %v278, %v277
      %vm295 = vcmask 31744
      %v297 = vsel %vm295, %v279, 0
      %v300 = vsel %vm295, %v280, 0
      %v303 = vsel %vm295, %v281, 0
      %v306 = vsel %vm295, %v282, 0
      %v309 = vsel %vm295, %v283, 0
      %v312 = vsel %vm295, %v284, 0
      %v315 = vsel %vm295, %v285, 0
      %v318 = vsel %vm295, %v286, 0
      %v321 = vsel %vm295, %v287, 0
      %v324 = vsel %vm295, %v288, 0
      %v327 = vsel %vm295, %v289, 0
      %v330 = vsel %vm295, %v290, 0
      %v333 = vsel %vm295, %v291, 0
      %v336 = vsel %vm295, %v292, 0
      %v339 = vsel %vm295, %v293, 0
      %v342 = vsel %vm295, %v294, 0
      %vm344 = vcmask 1041408
      %v346 = vsel %vm344, %v214, 0
      %348 = vmatprep.subr.bf16.mxu0 0
      %349 = vmatpush1.bf16.msra.mxu0 0
      %350 = vmatprep.subr.bf16.mxu0 0
      %351 = vmatpush1.bf16.msra.mxu0 0
      %352 = vmatprep.subr.bf16.mxu0 0
      %353 = vmatpush1.bf16.msra.mxu0 0
      %354 = vmatprep.subr.bf16.mxu0 0
      %355 = vmatpush1.bf16.msra.mxu0 0
      %356 = vmatprep.subr.bf16.mxu0 0
      %357 = vmatpush1.bf16.msra.mxu0 0
      %358 = vmatprep.subr.bf16.mxu0 0
      %359 = vmatpush1.bf16.msra.mxu0 0
      %360 = vmatprep.subr.bf16.mxu0 0
      %361 = vmatpush1.bf16.msra.mxu0 0
      %362 = vmatprep.subr.bf16.mxu0 0
      %363 = vmatpush1.bf16.msra.mxu0 %v346
      %364 = vmatprep.subr.bf16.mxu0 0
      %365 = vmatpush2.bf16.msra.mxu0 0
      %366 = vmatprep.subr.bf16.mxu0 0
      %367 = vmatpush2.bf16.msra.mxu0 0
      %368 = vmatprep.subr.bf16.mxu0 0
      %369 = vmatpush2.bf16.msra.mxu0 0
      %370 = vmatprep.subr.bf16.mxu0 0
      %371 = vmatpush2.bf16.msra.mxu0 0
      %372 = vmatprep.subr.bf16.mxu0 0
      %373 = vmatpush2.bf16.msra.mxu0 0
      %374 = vmatprep.subr.bf16.mxu0 0
      %375 = vmatpush2.bf16.msra.mxu0 0
      %376 = vmatprep.subr.bf16.mxu0 0
      %377 = vmatpush2.bf16.msra.mxu0 0
      %378 = vmatprep.subr.bf16.mxu0 0
      %379 = vmatpush2.bf16.msra.mxu0 0
      %380 = vmatprep.mubr.bf16.mxu0 0
      %381 = vmatmul.mubr.bf16.gmra.mxu0 %v297
      %v382 = vpop.f32.mrf.mxu0
      %v383 = vadd.f32 0.0, %v382
      %v384 = vpop.f32.mrf.mxu0
      %v385 = vpop.f32.mrf.mxu0
      %v386 = vadd.f32 0.0, %v385
      %v387 = vpop.f32.mrf.mxu0
      %388 = vmatprep.mubr.bf16.mxu0 0
      %389 = vmatmul.mubr.bf16.gmra.mxu0 %v300
      %v390 = vpop.f32.mrf.mxu0
      %v391 = vadd.f32 0.0, %v390
      %v392 = vpop.f32.mrf.mxu0
      %v393 = vpop.f32.mrf.mxu0
      %v394 = vadd.f32 0.0, %v393
      %v395 = vpop.f32.mrf.mxu0
      %396 = vmatprep.mubr.bf16.mxu0 0
      %397 = vmatmul.mubr.bf16.gmra.mxu0 %v303
      %v398 = vpop.f32.mrf.mxu0
      %v399 = vadd.f32 0.0, %v398
      %v400 = vpop.f32.mrf.mxu0
      %v401 = vpop.f32.mrf.mxu0
      %v402 = vadd.f32 0.0, %v401
      %v403 = vpop.f32.mrf.mxu0
      %404 = vmatprep.mubr.bf16.mxu0 0
      %405 = vmatmul.mubr.bf16.gmra.mxu0 %v306
      %v406 = vpop.f32.mrf.mxu0
      %v407 = vadd.f32 0.0, %v406
      %v408 = vpop.f32.mrf.mxu0
      %v409 = vpop.f32.mrf.mxu0
      %v410 = vadd.f32 0.0, %v409
      %v411 = vpop.f32.mrf.mxu0
      %412 = vmatprep.mubr.bf16.mxu0 0
      %413 = vmatmul.mubr.bf16.gmra.mxu0 %v309
      %v414 = vpop.f32.mrf.mxu0
      %v415 = vadd.f32 0.0, %v414
      %v416 = vpop.f32.mrf.mxu0
      %v417 = vpop.f32.mrf.mxu0
      %v418 = vadd.f32 0.0, %v417
      %v419 = vpop.f32.mrf.mxu0
      %420 = vmatprep.mubr.bf16.mxu0 0
      %421 = vmatmul.mubr.bf16.gmra.mxu0 %v312
      %v422 = vpop.f32.mrf.mxu0
      %v423 = vadd.f32 0.0, %v422
      %v424 = vpop.f32.mrf.mxu0
      %v425 = vpop.f32.mrf.mxu0
      %v426 = vadd.f32 0.0, %v425
      %v427 = vpop.f32.mrf.mxu0
      %428 = vmatprep.mubr.bf16.mxu0 0
      %429 = vmatmul.mubr.bf16.gmra.mxu0 %v315
      %v430 = vpop.f32.mrf.mxu0
      %v431 = vadd.f32 0.0, %v430
      %v432 = vpop.f32.mrf.mxu0
      %v433 = vpop.f32.mrf.mxu0
      %v434 = vadd.f32 0.0, %v433
      %v435 = vpop.f32.mrf.mxu0
      %436 = vmatprep.mubr.bf16.mxu0 0
      %437 = vmatmul.mubr.bf16.gmra.mxu0 %v318
      %v438 = vpop.f32.mrf.mxu0
      %v439 = vadd.f32 0.0, %v438
      %v440 = vpop.f32.mrf.mxu0
      %v441 = vpop.f32.mrf.mxu0
      %v442 = vadd.f32 0.0, %v441
      %v443 = vpop.f32.mrf.mxu0
      %444 = vmatprep.mubr.bf16.mxu0 0
      %445 = vmatmul.mubr.bf16.gmra.mxu0 %v321
      %v446 = vpop.f32.mrf.mxu0
      %v447 = vadd.f32 0.0, %v446
      %v448 = vpop.f32.mrf.mxu0
      %v449 = vpop.f32.mrf.mxu0
      %v450 = vadd.f32 0.0, %v449
      %v451 = vpop.f32.mrf.mxu0
      %452 = vmatprep.mubr.bf16.mxu0 0
      %453 = vmatmul.mubr.bf16.gmra.mxu0 %v324
      %v454 = vpop.f32.mrf.mxu0
      %v455 = vadd.f32 0.0, %v454
      %v456 = vpop.f32.mrf.mxu0
      %v457 = vpop.f32.mrf.mxu0
      %v458 = vadd.f32 0.0, %v457
      %v459 = vpop.f32.mrf.mxu0
      %460 = vmatprep.mubr.bf16.mxu0 0
      %461 = vmatmul.mubr.bf16.gmra.mxu0 %v327
      %v462 = vpop.f32.mrf.mxu0
      %v463 = vadd.f32 0.0, %v462
      %v464 = vpop.f32.mrf.mxu0
      %v465 = vpop.f32.mrf.mxu0
      %v466 = vadd.f32 0.0, %v465
      %v467 = vpop.f32.mrf.mxu0
      %468 = vmatprep.mubr.bf16.mxu0 0
      %469 = vmatmul.mubr.bf16.gmra.mxu0 %v330
      %v470 = vpop.f32.mrf.mxu0
      %v471 = vadd.f32 0.0, %v470
      %v472 = vpop.f32.mrf.mxu0
      %v473 = vpop.f32.mrf.mxu0
      %v474 = vadd.f32 0.0, %v473
      %v475 = vpop.f32.mrf.mxu0
      %476 = vmatprep.mubr.bf16.mxu0 0
      %477 = vmatmul.mubr.bf16.gmra.mxu0 %v333
      %v478 = vpop.f32.mrf.mxu0
      %v479 = vadd.f32 0.0, %v478
      %v480 = vpop.f32.mrf.mxu0
      %v481 = vpop.f32.mrf.mxu0
      %v482 = vadd.f32 0.0, %v481
      %v483 = vpop.f32.mrf.mxu0
      %484 = vmatprep.mubr.bf16.mxu0 0
      %485 = vmatmul.mubr.bf16.gmra.mxu0 %v336
      %v486 = vpop.f32.mrf.mxu0
      %v487 = vadd.f32 0.0, %v486
      %v488 = vpop.f32.mrf.mxu0
      %v489 = vpop.f32.mrf.mxu0
      %v490 = vadd.f32 0.0, %v489
      %v491 = vpop.f32.mrf.mxu0
      %492 = vmatprep.mubr.bf16.mxu0 0
      %493 = vmatmul.mubr.bf16.gmra.mxu0 %v339
      %v494 = vpop.f32.mrf.mxu0
      %v495 = vadd.f32 0.0, %v494
      %v496 = vpop.f32.mrf.mxu0
      %v497 = vpop.f32.mrf.mxu0
      %v498 = vadd.f32 0.0, %v497
      %v499 = vpop.f32.mrf.mxu0
      %500 = vmatprep.mubr.bf16.mxu0 0
      %501 = vmatmul.mubr.bf16.gmra.mxu0 %v342
      %v502 = vpop.f32.mrf.mxu0
      %v503 = vadd.f32 0.0, %v502
      %v504 = vpop.f32.mrf.mxu0
      %v505 = vpop.f32.mrf.mxu0
      %v506 = vadd.f32 0.0, %v505
      %v507 = vpop.f32.mrf.mxu0
      %508 = vdwg.mxu0
      %v509 = vmul.f32 %v383, 0.75
      %v510 = vmul.f32 %v386, 0.75
      %v511 = vmul.f32 %v391, 0.75
      %v512 = vmul.f32 %v394, 0.75
      %v513 = vmul.f32 %v399, 0.75
      %v514 = vmul.f32 %v402, 0.75
      %v515 = vmul.f32 %v407, 0.75
      %v516 = vmul.f32 %v410, 0.75
      %v517 = vmul.f32 %v415, 0.75
      %v518 = vmul.f32 %v418, 0.75
      %v519 = vmul.f32 %v423, 0.75
      %v520 = vmul.f32 %v426, 0.75
      %v521 = vmul.f32 %v431, 0.75
      %v522 = vmul.f32 %v434, 0.75
      %v523 = vmul.f32 %v439, 0.75
      %v524 = vmul.f32 %v442, 0.75
      %v525 = vmul.f32 %v447, 0.75
      %v526 = vmul.f32 %v450, 0.75
      %v527 = vmul.f32 %v455, 0.75
      %v528 = vmul.f32 %v458, 0.75
      %v529 = vmul.f32 %v463, 0.75
      %v530 = vmul.f32 %v466, 0.75
      %v531 = vmul.f32 %v471, 0.75
      %v532 = vmul.f32 %v474, 0.75
      %v533 = vmul.f32 %v479, 0.75
      %v534 = vmul.f32 %v482, 0.75
      %v535 = vmul.f32 %v487, 0.75
      %v536 = vmul.f32 %v490, 0.75
      %v537 = vmul.f32 %v495, 0.75
      %v538 = vmul.f32 %v498, 0.75
      %v539 = vmul.f32 %v503, 0.75
      %v540 = vmul.f32 %v506, 0.75
      %v541 = vmul.f32 %v383, 0.25
      %v542 = vmul.f32 %v386, 0.25
      %v543 = vmul.f32 %v391, 0.25
      %v544 = vmul.f32 %v394, 0.25
      %v545 = vmul.f32 %v399, 0.25
      %v546 = vmul.f32 %v402, 0.25
      %v547 = vmul.f32 %v407, 0.25
      %v548 = vmul.f32 %v410, 0.25
      %v549 = vmul.f32 %v415, 0.25
      %v550 = vmul.f32 %v418, 0.25
      %v551 = vmul.f32 %v423, 0.25
      %v552 = vmul.f32 %v426, 0.25
      %v553 = vmul.f32 %v431, 0.25
      %v554 = vmul.f32 %v434, 0.25
      %v555 = vmul.f32 %v439, 0.25
      %v556 = vmul.f32 %v442, 0.25
      %v557 = vmul.f32 %v447, 0.25
      %v558 = vmul.f32 %v450, 0.25
      %v559 = vmul.f32 %v455, 0.25
      %v560 = vmul.f32 %v458, 0.25
      %v561 = vmul.f32 %v463, 0.25
      %v562 = vmul.f32 %v466, 0.25
      %v563 = vmul.f32 %v471, 0.25
      %v564 = vmul.f32 %v474, 0.25
      %v565 = vmul.f32 %v479, 0.25
      %v566 = vmul.f32 %v482, 0.25
      %v567 = vmul.f32 %v487, 0.25
      %v568 = vmul.f32 %v490, 0.25
      %v569 = vmul.f32 %v495, 0.25
      %v570 = vmul.f32 %v498, 0.25
      %v571 = vadd.f32 %v509, %v541
      %v572 = vadd.f32 %v510, %v542
      %v573 = vadd.f32 %v511, %v541
      %v574 = vadd.f32 %v512, %v542
      %v575 = vadd.f32 %v513, %v543
      %v576 = vadd.f32 %v514, %v544
      %v577 = vadd.f32 %v515, %v545
      %v578 = vadd.f32 %v516, %v546
      %v579 = vadd.f32 %v517, %v547
      %v580 = vadd.f32 %v518, %v548
      %v581 = vadd.f32 %v519, %v549
      %v582 = vadd.f32 %v520, %v550
      %v583 = vadd.f32 %v521, %v551
      %v584 = vadd.f32 %v522, %v552
      %v585 = vadd.f32 %v523, %v553
      %v586 = vadd.f32 %v524, %v554
      %v587 = vadd.f32 %v525, %v555
      %v588 = vadd.f32 %v526, %v556
      %v589 = vadd.f32 %v527, %v557
      %v590 = vadd.f32 %v528, %v558
      %v591 = vadd.f32 %v529, %v559
      %v592 = vadd.f32 %v530, %v560
      %v593 = vadd.f32 %v531, %v561
      %v594 = vadd.f32 %v532, %v562
      %v595 = vadd.f32 %v533, %v563
      %v596 = vadd.f32 %v534, %v564
      %v597 = vadd.f32 %v535, %v565
      %v598 = vadd.f32 %v536, %v566
      %v599 = vadd.f32 %v537, %v567
      %v600 = vadd.f32 %v538, %v568
      %v601 = vadd.f32 %v539, %v569
      %v602 = vadd.f32 %v540, %v570
      %v603 = vmul.f32 %v503, 0.25
      %v604 = vmul.f32 %v506, 0.25
      %v605 = vadd.f32 %v509, %v543
      %v606 = vadd.f32 %v510, %v544
      %v607 = vadd.f32 %v511, %v545
      %v608 = vadd.f32 %v512, %v546
      %v609 = vadd.f32 %v513, %v547
      %v610 = vadd.f32 %v514, %v548
      %v611 = vadd.f32 %v515, %v549
      %v612 = vadd.f32 %v516, %v550
      %v613 = vadd.f32 %v517, %v551
      %v614 = vadd.f32 %v518, %v552
      %v615 = vadd.f32 %v519, %v553
      %v616 = vadd.f32 %v520, %v554
      %v617 = vadd.f32 %v521, %v555
      %v618 = vadd.f32 %v522, %v556
      %v619 = vadd.f32 %v523, %v557
      %v620 = vadd.f32 %v524, %v558
      %v621 = vadd.f32 %v525, %v559
      %v622 = vadd.f32 %v526, %v560
      %v623 = vadd.f32 %v527, %v561
      %v624 = vadd.f32 %v528, %v562
      %v625 = vadd.f32 %v529, %v563
      %v626 = vadd.f32 %v530, %v564
      %v627 = vadd.f32 %v531, %v565
      %v628 = vadd.f32 %v532, %v566
      %v629 = vadd.f32 %v533, %v567
      %v630 = vadd.f32 %v534, %v568
      %v631 = vadd.f32 %v535, %v569
      %v632 = vadd.f32 %v536, %v570
      %v633 = vadd.f32 %v537, %v603
      %v634 = vadd.f32 %v538, %v604
      %v635 = vadd.f32 %v539, %v603
      %v636 = vadd.f32 %v540, %v604
      %vm701 = vcmask 1040384
      %v702 = vrot.slane %v571, 7
      %v703 = vrot.slane %v572, 7
      %v704 = vsel %vm701, %v702, %v703
      %v705 = vrot.slane %v605, 7
      %v706 = vrot.slane %v606, 7
      %v707 = vsel %vm701, %v705, %v706
      %v708 = vrot.slane %v573, 7
      %v709 = vrot.slane %v574, 7
      %v710 = vsel %vm701, %v708, %v709
      %v711 = vrot.slane %v607, 7
      %v712 = vrot.slane %v608, 7
      %v713 = vsel %vm701, %v711, %v712
      %v714 = vrot.slane %v575, 7
      %v715 = vrot.slane %v576, 7
      %v716 = vsel %vm701, %v714, %v715
      %v717 = vrot.slane %v609, 7
      %v718 = vrot.slane %v610, 7
      %v719 = vsel %vm701, %v717, %v718
      %v720 = vrot.slane %v577, 7
      %v721 = vrot.slane %v578, 7
      %v722 = vsel %vm701, %v720, %v721
      %v723 = vrot.slane %v611, 7
      %v724 = vrot.slane %v612, 7
      %v725 = vsel %vm701, %v723, %v724
      %v726 = vrot.slane %v579, 7
      %v727 = vrot.slane %v580, 7
      %v728 = vsel %vm701, %v726, %v727
      %v729 = vrot.slane %v613, 7
      %v730 = vrot.slane %v614, 7
      %v731 = vsel %vm701, %v729, %v730
      %v732 = vrot.slane %v581, 7
      %v733 = vrot.slane %v582, 7
      %v734 = vsel %vm701, %v732, %v733
      %v735 = vrot.slane %v615, 7
      %v736 = vrot.slane %v616, 7
      %v737 = vsel %vm701, %v735, %v736
      %v738 = vrot.slane %v583, 7
      %v739 = vrot.slane %v584, 7
      %v740 = vsel %vm701, %v738, %v739
      %v741 = vrot.slane %v617, 7
      %v742 = vrot.slane %v618, 7
      %v743 = vsel %vm701, %v741, %v742
      %v744 = vrot.slane %v585, 7
      %v745 = vrot.slane %v586, 7
      %v746 = vsel %vm701, %v744, %v745
      %v747 = vrot.slane %v619, 7
      %v748 = vrot.slane %v620, 7
      %v749 = vsel %vm701, %v747, %v748
      %v750 = vrot.slane %v587, 7
      %v751 = vrot.slane %v588, 7
      %v752 = vsel %vm701, %v750, %v751
      %v753 = vrot.slane %v621, 7
      %v754 = vrot.slane %v622, 7
      %v755 = vsel %vm701, %v753, %v754
      %v756 = vrot.slane %v589, 7
      %v757 = vrot.slane %v590, 7
      %v758 = vsel %vm701, %v756, %v757
      %v759 = vrot.slane %v623, 7
      %v760 = vrot.slane %v624, 7
      %v761 = vsel %vm701, %v759, %v760
      %v762 = vrot.slane %v591, 7
      %v763 = vrot.slane %v592, 7
      %v764 = vsel %vm701, %v762, %v763
      %v765 = vrot.slane %v625, 7
      %v766 = vrot.slane %v626, 7
      %v767 = vsel %vm701, %v765, %v766
      %v768 = vrot.slane %v593, 7
      %v769 = vrot.slane %v594, 7
      %v770 = vsel %vm701, %v768, %v769
      %v771 = vrot.slane %v627, 7
      %v772 = vrot.slane %v628, 7
      %v773 = vsel %vm701, %v771, %v772
      %v774 = vrot.slane %v595, 7
      %v775 = vrot.slane %v596, 7
      %v776 = vsel %vm701, %v774, %v775
      %v777 = vrot.slane %v629, 7
      %v778 = vrot.slane %v630, 7
      %v779 = vsel %vm701, %v777, %v778
      %v780 = vrot.slane %v597, 7
      %v781 = vrot.slane %v598, 7
      %v782 = vsel %vm701, %v780, %v781
      %v783 = vrot.slane %v631, 7
      %v784 = vrot.slane %v632, 7
      %v785 = vsel %vm701, %v783, %v784
      %v786 = vrot.slane %v599, 7
      %v787 = vrot.slane %v600, 7
      %v788 = vsel %vm701, %v786, %v787
      %v789 = vrot.slane %v633, 7
      %v790 = vrot.slane %v634, 7
      %v791 = vsel %vm701, %v789, %v790
      %v792 = vrot.slane %v601, 7
      %v793 = vrot.slane %v602, 7
      %v794 = vsel %vm701, %v792, %v793
      %v795 = vrot.slane %v635, 7
      %v796 = vrot.slane %v636, 7
      %v797 = vsel %vm701, %v795, %v796
      %v862 = vsel %vm701, %v571, %v702
      %v863 = vsel %vm701, %v605, %v705
      %v864 = vsel %vm701, %v573, %v708
      %v865 = vsel %vm701, %v607, %v711
      %v866 = vsel %vm701, %v575, %v714
      %v867 = vsel %vm701, %v609, %v717
      %v868 = vsel %vm701, %v577, %v720
      %v869 = vsel %vm701, %v611, %v723
      %v870 = vsel %vm701, %v579, %v726
      %v871 = vsel %vm701, %v613, %v729
      %v872 = vsel %vm701, %v581, %v732
      %v873 = vsel %vm701, %v615, %v735
      %v874 = vsel %vm701, %v583, %v738
      %v875 = vsel %vm701, %v617, %v741
      %v876 = vsel %vm701, %v585, %v744
      %v877 = vsel %vm701, %v619, %v747
      %v878 = vsel %vm701, %v587, %v750
      %v879 = vsel %vm701, %v621, %v753
      %v880 = vsel %vm701, %v589, %v756
      %v881 = vsel %vm701, %v623, %v759
      %v882 = vsel %vm701, %v591, %v762
      %v883 = vsel %vm701, %v625, %v765
      %v884 = vsel %vm701, %v593, %v768
      %v885 = vsel %vm701, %v627, %v771
      %v886 = vsel %vm701, %v595, %v774
      %v887 = vsel %vm701, %v629, %v777
      %v888 = vsel %vm701, %v597, %v780
      %v889 = vsel %vm701, %v631, %v783
      %v890 = vsel %vm701, %v599, %v786
      %v891 = vsel %vm701, %v633, %v789
      %v892 = vsel %vm701, %v601, %v792
      %v893 = vsel %vm701, %v635, %v795
      %vm894 = vcmask 1046528
      %v895 = vrot.slane %v571, 1
      %v896 = vrot.slane %v572, 1
      %v897 = vsel %vm894, %v895, %v896
      %v898 = vrot.slane %v605, 1
      %v899 = vrot.slane %v606, 1
      %v900 = vsel %vm894, %v898, %v899
      %v901 = vrot.slane %v573, 1
      %v902 = vrot.slane %v574, 1
      %v903 = vsel %vm894, %v901, %v902
      %v904 = vrot.slane %v607, 1
      %v905 = vrot.slane %v608, 1
      %v906 = vsel %vm894, %v904, %v905
      %v907 = vrot.slane %v575, 1
      %v908 = vrot.slane %v576, 1
      %v909 = vsel %vm894, %v907, %v908
      %v910 = vrot.slane %v609, 1
      %v911 = vrot.slane %v610, 1
      %v912 = vsel %vm894, %v910, %v911
      %v913 = vrot.slane %v577, 1
      %v914 = vrot.slane %v578, 1
      %v915 = vsel %vm894, %v913, %v914
      %v916 = vrot.slane %v611, 1
      %v917 = vrot.slane %v612, 1
      %v918 = vsel %vm894, %v916, %v917
      %v919 = vrot.slane %v579, 1
      %v920 = vrot.slane %v580, 1
      %v921 = vsel %vm894, %v919, %v920
      %v922 = vrot.slane %v613, 1
      %v923 = vrot.slane %v614, 1
      %v924 = vsel %vm894, %v922, %v923
      %v925 = vrot.slane %v581, 1
      %v926 = vrot.slane %v582, 1
      %v927 = vsel %vm894, %v925, %v926
      %v928 = vrot.slane %v615, 1
      %v929 = vrot.slane %v616, 1
      %v930 = vsel %vm894, %v928, %v929
      %v931 = vrot.slane %v583, 1
      %v932 = vrot.slane %v584, 1
      %v933 = vsel %vm894, %v931, %v932
      %v934 = vrot.slane %v617, 1
      %v935 = vrot.slane %v618, 1
      %v936 = vsel %vm894, %v934, %v935
      %v937 = vrot.slane %v585, 1
      %v938 = vrot.slane %v586, 1
      %v939 = vsel %vm894, %v937, %v938
      %v940 = vrot.slane %v619, 1
      %v941 = vrot.slane %v620, 1
      %v942 = vsel %vm894, %v940, %v941
      %v943 = vrot.slane %v587, 1
      %v944 = vrot.slane %v588, 1
      %v945 = vsel %vm894, %v943, %v944
      %v946 = vrot.slane %v621, 1
      %v947 = vrot.slane %v622, 1
      %v948 = vsel %vm894, %v946, %v947
      %v949 = vrot.slane %v589, 1
      %v950 = vrot.slane %v590, 1
      %v951 = vsel %vm894, %v949, %v950
      %v952 = vrot.slane %v623, 1
      %v953 = vrot.slane %v624, 1
      %v954 = vsel %vm894, %v952, %v953
      %v955 = vrot.slane %v591, 1
      %v956 = vrot.slane %v592, 1
      %v957 = vsel %vm894, %v955, %v956
      %v958 = vrot.slane %v625, 1
      %v959 = vrot.slane %v626, 1
      %v960 = vsel %vm894, %v958, %v959
      %v961 = vrot.slane %v593, 1
      %v962 = vrot.slane %v594, 1
      %v963 = vsel %vm894, %v961, %v962
      %v964 = vrot.slane %v627, 1
      %v965 = vrot.slane %v628, 1
      %v966 = vsel %vm894, %v964, %v965
      %v967 = vrot.slane %v595, 1
      %v968 = vrot.slane %v596, 1
      %v969 = vsel %vm894, %v967, %v968
      %v970 = vrot.slane %v629, 1
      %v971 = vrot.slane %v630, 1
      %v972 = vsel %vm894, %v970, %v971
      %v973 = vrot.slane %v597, 1
      %v974 = vrot.slane %v598, 1
      %v975 = vsel %vm894, %v973, %v974
      %v976 = vrot.slane %v631, 1
      %v977 = vrot.slane %v632, 1
      %v978 = vsel %vm894, %v976, %v977
      %v979 = vrot.slane %v599, 1
      %v980 = vrot.slane %v600, 1
      %v981 = vsel %vm894, %v979, %v980
      %v982 = vrot.slane %v633, 1
      %v983 = vrot.slane %v634, 1
      %v984 = vsel %vm894, %v982, %v983
      %v985 = vrot.slane %v601, 1
      %v986 = vrot.slane %v602, 1
      %v987 = vsel %vm894, %v985, %v986
      %v988 = vrot.slane %v635, 1
      %v989 = vrot.slane %v636, 1
      %v990 = vsel %vm894, %v988, %v989
      %v1055 = vsel %vm894, %v896, %v572
      %v1056 = vsel %vm894, %v899, %v606
      %v1057 = vsel %vm894, %v902, %v574
      %v1058 = vsel %vm894, %v905, %v608
      %v1059 = vsel %vm894, %v908, %v576
      %v1060 = vsel %vm894, %v911, %v610
      %v1061 = vsel %vm894, %v914, %v578
      %v1062 = vsel %vm894, %v917, %v612
      %v1063 = vsel %vm894, %v920, %v580
      %v1064 = vsel %vm894, %v923, %v614
      %v1065 = vsel %vm894, %v926, %v582
      %v1066 = vsel %vm894, %v929, %v616
      %v1067 = vsel %vm894, %v932, %v584
      %v1068 = vsel %vm894, %v935, %v618
      %v1069 = vsel %vm894, %v938, %v586
      %v1070 = vsel %vm894, %v941, %v620
      %v1071 = vsel %vm894, %v944, %v588
      %v1072 = vsel %vm894, %v947, %v622
      %v1073 = vsel %vm894, %v950, %v590
      %v1074 = vsel %vm894, %v953, %v624
      %v1075 = vsel %vm894, %v956, %v592
      %v1076 = vsel %vm894, %v959, %v626
      %v1077 = vsel %vm894, %v962, %v594
      %v1078 = vsel %vm894, %v965, %v628
      %v1079 = vsel %vm894, %v968, %v596
      %v1080 = vsel %vm894, %v971, %v630
      %v1081 = vsel %vm894, %v974, %v598
      %v1082 = vsel %vm894, %v977, %v632
      %v1083 = vsel %vm894, %v980, %v600
      %v1084 = vsel %vm894, %v983, %v634
      %v1085 = vsel %vm894, %v986, %v602
      %v1086 = vsel %vm894, %v989, %v636
      %v1087 = vmul.f32 %v571, 0.75
      %v1088 = vmul.f32 %v572, 0.75
      %v1089 = vmul.f32 %v605, 0.75
      %v1090 = vmul.f32 %v606, 0.75
      %v1091 = vmul.f32 %v573, 0.75
      %v1092 = vmul.f32 %v574, 0.75
      %v1093 = vmul.f32 %v607, 0.75
      %v1094 = vmul.f32 %v608, 0.75
      %v1095 = vmul.f32 %v575, 0.75
      %v1096 = vmul.f32 %v576, 0.75
      %v1097 = vmul.f32 %v609, 0.75
      %v1098 = vmul.f32 %v610, 0.75
      %v1099 = vmul.f32 %v577, 0.75
      %v1100 = vmul.f32 %v578, 0.75
      %v1101 = vmul.f32 %v611, 0.75
      %v1102 = vmul.f32 %v612, 0.75
      %v1103 = vmul.f32 %v579, 0.75
      %v1104 = vmul.f32 %v580, 0.75
      %v1105 = vmul.f32 %v613, 0.75
      %v1106 = vmul.f32 %v614, 0.75
      %v1107 = vmul.f32 %v581, 0.75
      %v1108 = vmul.f32 %v582, 0.75
      %v1109 = vmul.f32 %v615, 0.75
      %v1110 = vmul.f32 %v616, 0.75
      %v1111 = vmul.f32 %v583, 0.75
      %v1112 = vmul.f32 %v584, 0.75
      %v1113 = vmul.f32 %v617, 0.75
      %v1114 = vmul.f32 %v618, 0.75
      %v1115 = vmul.f32 %v585, 0.75
      %v1116 = vmul.f32 %v586, 0.75
      %v1117 = vmul.f32 %v619, 0.75
      %v1118 = vmul.f32 %v620, 0.75
      %v1119 = vmul.f32 %v587, 0.75
      %v1120 = vmul.f32 %v588, 0.75
      %v1121 = vmul.f32 %v621, 0.75
      %v1122 = vmul.f32 %v622, 0.75
      %v1123 = vmul.f32 %v589, 0.75
      %v1124 = vmul.f32 %v590, 0.75
      %v1125 = vmul.f32 %v623, 0.75
      %v1126 = vmul.f32 %v624, 0.75
      %v1127 = vmul.f32 %v591, 0.75
      %v1128 = vmul.f32 %v592, 0.75
      %v1129 = vmul.f32 %v625, 0.75
      %v1130 = vmul.f32 %v626, 0.75
      %v1131 = vmul.f32 %v593, 0.75
      %v1132 = vmul.f32 %v594, 0.75
      %v1133 = vmul.f32 %v627, 0.75
      %v1134 = vmul.f32 %v628, 0.75
      %v1135 = vmul.f32 %v595, 0.75
      %v1136 = vmul.f32 %v596, 0.75
      %v1137 = vmul.f32 %v629, 0.75
      %v1138 = vmul.f32 %v630, 0.75
      %v1139 = vmul.f32 %v597, 0.75
      %v1140 = vmul.f32 %v598, 0.75
      %v1141 = vmul.f32 %v631, 0.75
      %v1142 = vmul.f32 %v632, 0.75
      %v1143 = vmul.f32 %v599, 0.75
      %v1144 = vmul.f32 %v600, 0.75
      %v1145 = vmul.f32 %v633, 0.75
      %v1146 = vmul.f32 %v634, 0.75
      %v1147 = vmul.f32 %v601, 0.75
      %v1148 = vmul.f32 %v602, 0.75
      %v1149 = vmul.f32 %v635, 0.75
      %v1150 = vmul.f32 %v636, 0.75
      %v1151 = vmul.f32 %v862, 0.25
      %v1152 = vmul.f32 %v704, 0.25
      %v1153 = vmul.f32 %v863, 0.25
      %v1154 = vmul.f32 %v707, 0.25
      %v1155 = vmul.f32 %v864, 0.25
      %v1156 = vmul.f32 %v710, 0.25
      %v1157 = vmul.f32 %v865, 0.25
      %v1158 = vmul.f32 %v713, 0.25
      %v1159 = vmul.f32 %v866, 0.25
      %v1160 = vmul.f32 %v716, 0.25
      %v1161 = vmul.f32 %v867, 0.25
      %v1162 = vmul.f32 %v719, 0.25
      %v1163 = vmul.f32 %v868, 0.25
      %v1164 = vmul.f32 %v722, 0.25
      %v1165 = vmul.f32 %v869, 0.25
      %v1166 = vmul.f32 %v725, 0.25
      %v1167 = vmul.f32 %v870, 0.25
      %v1168 = vmul.f32 %v728, 0.25
      %v1169 = vmul.f32 %v871, 0.25
      %v1170 = vmul.f32 %v731, 0.25
      %v1171 = vmul.f32 %v872, 0.25
      %v1172 = vmul.f32 %v734, 0.25
      %v1173 = vmul.f32 %v873, 0.25
      %v1174 = vmul.f32 %v737, 0.25
      %v1175 = vmul.f32 %v874, 0.25
      %v1176 = vmul.f32 %v740, 0.25
      %v1177 = vmul.f32 %v875, 0.25
      %v1178 = vmul.f32 %v743, 0.25
      %v1179 = vmul.f32 %v876, 0.25
      %v1180 = vmul.f32 %v746, 0.25
      %v1181 = vmul.f32 %v877, 0.25
      %v1182 = vmul.f32 %v749, 0.25
      %v1183 = vmul.f32 %v878, 0.25
      %v1184 = vmul.f32 %v752, 0.25
      %v1185 = vmul.f32 %v879, 0.25
      %v1186 = vmul.f32 %v755, 0.25
      %v1187 = vmul.f32 %v880, 0.25
      %v1188 = vmul.f32 %v758, 0.25
      %v1189 = vmul.f32 %v881, 0.25
      %v1190 = vmul.f32 %v761, 0.25
      %v1191 = vmul.f32 %v882, 0.25
      %v1192 = vmul.f32 %v764, 0.25
      %v1193 = vmul.f32 %v883, 0.25
      %v1194 = vmul.f32 %v767, 0.25
      %v1195 = vmul.f32 %v884, 0.25
      %v1196 = vmul.f32 %v770, 0.25
      %v1197 = vmul.f32 %v885, 0.25
      %v1198 = vmul.f32 %v773, 0.25
      %v1199 = vmul.f32 %v886, 0.25
      %v1200 = vmul.f32 %v776, 0.25
      %v1201 = vmul.f32 %v887, 0.25
      %v1202 = vmul.f32 %v779, 0.25
      %v1203 = vmul.f32 %v888, 0.25
      %v1204 = vmul.f32 %v782, 0.25
      %v1205 = vmul.f32 %v889, 0.25
      %v1206 = vmul.f32 %v785, 0.25
      %v1207 = vmul.f32 %v890, 0.25
      %v1208 = vmul.f32 %v788, 0.25
      %v1209 = vmul.f32 %v891, 0.25
      %v1210 = vmul.f32 %v791, 0.25
      %v1211 = vmul.f32 %v892, 0.25
      %v1212 = vmul.f32 %v794, 0.25
      %v1213 = vmul.f32 %v893, 0.25
      %v1214 = vmul.f32 %v797, 0.25
      %v1215 = vadd.f32 %v1087, %v1151
      %v1216 = vadd.f32 %v1088, %v1152
      %v1217 = vadd.f32 %v1089, %v1153
      %v1218 = vadd.f32 %v1090, %v1154
      %v1219 = vadd.f32 %v1091, %v1155
      %v1220 = vadd.f32 %v1092, %v1156
      %v1221 = vadd.f32 %v1093, %v1157
      %v1222 = vadd.f32 %v1094, %v1158
      %v1223 = vadd.f32 %v1095, %v1159
      %v1224 = vadd.f32 %v1096, %v1160
      %v1225 = vadd.f32 %v1097, %v1161
      %v1226 = vadd.f32 %v1098, %v1162
      %v1227 = vadd.f32 %v1099, %v1163
      %v1228 = vadd.f32 %v1100, %v1164
      %v1229 = vadd.f32 %v1101, %v1165
      %v1230 = vadd.f32 %v1102, %v1166
      %v1231 = vadd.f32 %v1103, %v1167
      %v1232 = vadd.f32 %v1104, %v1168
      %v1233 = vadd.f32 %v1105, %v1169
      %v1234 = vadd.f32 %v1106, %v1170
      %v1235 = vadd.f32 %v1107, %v1171
      %v1236 = vadd.f32 %v1108, %v1172
      %v1237 = vadd.f32 %v1109, %v1173
      %v1238 = vadd.f32 %v1110, %v1174
      %v1239 = vadd.f32 %v1111, %v1175
      %v1240 = vadd.f32 %v1112, %v1176
      %v1241 = vadd.f32 %v1113, %v1177
      %v1242 = vadd.f32 %v1114, %v1178
      %v1243 = vadd.f32 %v1115, %v1179
      %v1244 = vadd.f32 %v1116, %v1180
      %v1245 = vadd.f32 %v1117, %v1181
      %v1246 = vadd.f32 %v1118, %v1182
      %v1247 = vadd.f32 %v1119, %v1183
      %v1248 = vadd.f32 %v1120, %v1184
      %v1249 = vadd.f32 %v1121, %v1185
      %v1250 = vadd.f32 %v1122, %v1186
      %v1251 = vadd.f32 %v1123, %v1187
      %v1252 = vadd.f32 %v1124, %v1188
      %v1253 = vadd.f32 %v1125, %v1189
      %v1254 = vadd.f32 %v1126, %v1190
      %v1255 = vadd.f32 %v1127, %v1191
      %v1256 = vadd.f32 %v1128, %v1192
      %v1257 = vadd.f32 %v1129, %v1193
      %v1258 = vadd.f32 %v1130, %v1194
      %v1259 = vadd.f32 %v1131, %v1195
      %v1260 = vadd.f32 %v1132, %v1196
      %v1261 = vadd.f32 %v1133, %v1197
      %v1262 = vadd.f32 %v1134, %v1198
      %v1263 = vadd.f32 %v1135, %v1199
      %v1264 = vadd.f32 %v1136, %v1200
      %v1265 = vadd.f32 %v1137, %v1201
      %v1266 = vadd.f32 %v1138, %v1202
      %v1267 = vadd.f32 %v1139, %v1203
      %v1268 = vadd.f32 %v1140, %v1204
      %v1269 = vadd.f32 %v1141, %v1205
      %v1270 = vadd.f32 %v1142, %v1206
      %v1271 = vadd.f32 %v1143, %v1207
      %v1272 = vadd.f32 %v1144, %v1208
      %v1273 = vadd.f32 %v1145, %v1209
      %v1274 = vadd.f32 %v1146, %v1210
      %v1275 = vadd.f32 %v1147, %v1211
      %v1276 = vadd.f32 %v1148, %v1212
      %v1277 = vadd.f32 %v1149, %v1213
      %v1278 = vadd.f32 %v1150, %v1214
      %vm1279 = vcmask 64512
      %1280 = vst.msk [vmem:[%s180] sm:$0xff] %vm1279, %v1215
      %1281 = vst.msk [vmem:[%s180 + $0x8] sm:$0xff] %vm1279, %v1216
      %1282 = vst.msk [vmem:[%s180 + $0x10] sm:$0xff] %vm1279, %v1217
      %1283 = vst.msk [vmem:[%s180 + $0x18] sm:$0xff] %vm1279, %v1218
      %1284 = vst.msk [vmem:[%s180 + $0x20] sm:$0xff] %vm1279, %v1219
      %1285 = vst.msk [vmem:[%s180 + $0x28] sm:$0xff] %vm1279, %v1220
      %1286 = vst.msk [vmem:[%s180 + $0x30] sm:$0xff] %vm1279, %v1221
      %1287 = vst.msk [vmem:[%s180 + $0x38] sm:$0xff] %vm1279, %v1222
      %1288 = vst.msk [vmem:[%s180 + $0x40] sm:$0xff] %vm1279, %v1223
      %1289 = vst.msk [vmem:[%s180 + $0x48] sm:$0xff] %vm1279, %v1224
      %1290 = vst.msk [vmem:[%s180 + $0x50] sm:$0xff] %vm1279, %v1225
      %1291 = vst.msk [vmem:[%s180 + $0x58] sm:$0xff] %vm1279, %v1226
      %1292 = vst.msk [vmem:[%s180 + $0x60] sm:$0xff] %vm1279, %v1227
      %1293 = vst.msk [vmem:[%s180 + $0x68] sm:$0xff] %vm1279, %v1228
      %1294 = vst.msk [vmem:[%s180 + $0x70] sm:$0xff] %vm1279, %v1229
      %1295 = vst.msk [vmem:[%s180 + $0x78] sm:$0xff] %vm1279, %v1230
      %1296 = vst.msk [vmem:[%s180 + $0x80] sm:$0xff] %vm1279, %v1231
      %1297 = vst.msk [vmem:[%s180 + $0x88] sm:$0xff] %vm1279, %v1232
      %1298 = vst.msk [vmem:[%s180 + $0x90] sm:$0xff] %vm1279, %v1233
      %1299 = vst.msk [vmem:[%s180 + $0x98] sm:$0xff] %vm1279, %v1234
      %1300 = vst.msk [vmem:[%s180 + $0xa0] sm:$0xff] %vm1279, %v1235
      %1301 = vst.msk [vmem:[%s180 + $0xa8] sm:$0xff] %vm1279, %v1236
      %1302 = vst.msk [vmem:[%s180 + $0xb0] sm:$0xff] %vm1279, %v1237
      %1303 = vst.msk [vmem:[%s180 + $0xb8] sm:$0xff] %vm1279, %v1238
      %1304 = vst.msk [vmem:[%s180 + $0xc0] sm:$0xff] %vm1279, %v1239
      %1305 = vst.msk [vmem:[%s180 + $0xc8] sm:$0xff] %vm1279, %v1240
      %1306 = vst.msk [vmem:[%s180 + $0xd0] sm:$0xff] %vm1279, %v1241
      %1307 = vst.msk [vmem:[%s180 + $0xd8] sm:$0xff] %vm1279, %v1242
      %1308 = vst.msk [vmem:[%s180 + $0xe0] sm:$0xff] %vm1279, %v1243
      %1309 = vst.msk [vmem:[%s180 + $0xe8] sm:$0xff] %vm1279, %v1244
      %1310 = vst.msk [vmem:[%s180 + $0xf0] sm:$0xff] %vm1279, %v1245
      %1311 = vst.msk [vmem:[%s180 + $0xf8] sm:$0xff] %vm1279, %v1246
      %1312 = vst.msk [vmem:[%s180 + $0x100] sm:$0xff] %vm1279, %v1247
      %1313 = vst.msk [vmem:[%s180 + $0x108] sm:$0xff] %vm1279, %v1248
      %1314 = vst.msk [vmem:[%s180 + $0x110] sm:$0xff] %vm1279, %v1249
      %1315 = vst.msk [vmem:[%s180 + $0x118] sm:$0xff] %vm1279, %v1250
      %1316 = vst.msk [vmem:[%s180 + $0x120] sm:$0xff] %vm1279, %v1251
      %1317 = vst.msk [vmem:[%s180 + $0x128] sm:$0xff] %vm1279, %v1252
      %1318 = vst.msk [vmem:[%s180 + $0x130] sm:$0xff] %vm1279, %v1253
      %1319 = vst.msk [vmem:[%s180 + $0x138] sm:$0xff] %vm1279, %v1254
      %1320 = vst.msk [vmem:[%s180 + $0x140] sm:$0xff] %vm1279, %v1255
      %1321 = vst.msk [vmem:[%s180 + $0x148] sm:$0xff] %vm1279, %v1256
      %1322 = vst.msk [vmem:[%s180 + $0x150] sm:$0xff] %vm1279, %v1257
      %1323 = vst.msk [vmem:[%s180 + $0x158] sm:$0xff] %vm1279, %v1258
      %1324 = vst.msk [vmem:[%s180 + $0x160] sm:$0xff] %vm1279, %v1259
      %1325 = vst.msk [vmem:[%s180 + $0x168] sm:$0xff] %vm1279, %v1260
      %1326 = vst.msk [vmem:[%s180 + $0x170] sm:$0xff] %vm1279, %v1261
      %1327 = vst.msk [vmem:[%s180 + $0x178] sm:$0xff] %vm1279, %v1262
      %1328 = vst.msk [vmem:[%s180 + $0x180] sm:$0xff] %vm1279, %v1263
      %1329 = vst.msk [vmem:[%s180 + $0x188] sm:$0xff] %vm1279, %v1264
      %1330 = vst.msk [vmem:[%s180 + $0x190] sm:$0xff] %vm1279, %v1265
      %1331 = vst.msk [vmem:[%s180 + $0x198] sm:$0xff] %vm1279, %v1266
      %1332 = vst.msk [vmem:[%s180 + $0x1a0] sm:$0xff] %vm1279, %v1267
      %1333 = vst.msk [vmem:[%s180 + $0x1a8] sm:$0xff] %vm1279, %v1268
      %1334 = vst.msk [vmem:[%s180 + $0x1b0] sm:$0xff] %vm1279, %v1269
      %1335 = vst.msk [vmem:[%s180 + $0x1b8] sm:$0xff] %vm1279, %v1270
      %1336 = vst.msk [vmem:[%s180 + $0x1c0] sm:$0xff] %vm1279, %v1271
      %1337 = vst.msk [vmem:[%s180 + $0x1c8] sm:$0xff] %vm1279, %v1272
      %1338 = vst.msk [vmem:[%s180 + $0x1d0] sm:$0xff] %vm1279, %v1273
      %1339 = vst.msk [vmem:[%s180 + $0x1d8] sm:$0xff] %vm1279, %v1274
      %1340 = vst.msk [vmem:[%s180 + $0x1e0] sm:$0xff] %vm1279, %v1275
      %1341 = vst.msk [vmem:[%s180 + $0x1e8] sm:$0xff] %vm1279, %v1276
      %1342 = vst.msk [vmem:[%s180 + $0x1f0] sm:$0xff] %vm1279, %v1277
      %1343 = vst.msk [vmem:[%s180 + $0x1f8] sm:$0xff] %vm1279, %v1278
      %v1344 = vmul.f32 %v897, 0.25
      %v1345 = vmul.f32 %v1055, 0.25
      %v1346 = vmul.f32 %v900, 0.25
      %v1347 = vmul.f32 %v1056, 0.25
      %v1348 = vmul.f32 %v903, 0.25
      %v1349 = vmul.f32 %v1057, 0.25
      %v1350 = vmul.f32 %v906, 0.25
      %v1351 = vmul.f32 %v1058, 0.25
      %v1352 = vmul.f32 %v909, 0.25
      %v1353 = vmul.f32 %v1059, 0.25
      %v1354 = vmul.f32 %v912, 0.25
      %v1355 = vmul.f32 %v1060, 0.25
      %v1356 = vmul.f32 %v915, 0.25
      %v1357 = vmul.f32 %v1061, 0.25
      %v1358 = vmul.f32 %v918, 0.25
      %v1359 = vmul.f32 %v1062, 0.25
      %v1360 = vmul.f32 %v921, 0.25
      %v1361 = vmul.f32 %v1063, 0.25
      %v1362 = vmul.f32 %v924, 0.25
      %v1363 = vmul.f32 %v1064, 0.25
      %v1364 = vmul.f32 %v927, 0.25
      %v1365 = vmul.f32 %v1065, 0.25
      %v1366 = vmul.f32 %v930, 0.25
      %v1367 = vmul.f32 %v1066, 0.25
      %v1368 = vmul.f32 %v933, 0.25
      %v1369 = vmul.f32 %v1067, 0.25
      %v1370 = vmul.f32 %v936, 0.25
      %v1371 = vmul.f32 %v1068, 0.25
      %v1372 = vmul.f32 %v939, 0.25
      %v1373 = vmul.f32 %v1069, 0.25
      %v1374 = vmul.f32 %v942, 0.25
      %v1375 = vmul.f32 %v1070, 0.25
      %v1376 = vmul.f32 %v945, 0.25
      %v1377 = vmul.f32 %v1071, 0.25
      %v1378 = vmul.f32 %v948, 0.25
      %v1379 = vmul.f32 %v1072, 0.25
      %v1380 = vmul.f32 %v951, 0.25
      %v1381 = vmul.f32 %v1073, 0.25
      %v1382 = vmul.f32 %v954, 0.25
      %v1383 = vmul.f32 %v1074, 0.25
      %v1384 = vmul.f32 %v957, 0.25
      %v1385 = vmul.f32 %v1075, 0.25
      %v1386 = vmul.f32 %v960, 0.25
      %v1387 = vmul.f32 %v1076, 0.25
      %v1388 = vmul.f32 %v963, 0.25
      %v1389 = vmul.f32 %v1077, 0.25
      %v1390 = vmul.f32 %v966, 0.25
      %v1391 = vmul.f32 %v1078, 0.25
      %v1392 = vmul.f32 %v969, 0.25
      %v1393 = vmul.f32 %v1079, 0.25
      %v1394 = vmul.f32 %v972, 0.25
      %v1395 = vmul.f32 %v1080, 0.25
      %v1396 = vmul.f32 %v975, 0.25
      %v1397 = vmul.f32 %v1081, 0.25
      %v1398 = vmul.f32 %v978, 0.25
      %v1399 = vmul.f32 %v1082, 0.25
      %v1400 = vmul.f32 %v981, 0.25
      %v1401 = vmul.f32 %v1083, 0.25
      %v1402 = vmul.f32 %v984, 0.25
      %v1403 = vmul.f32 %v1084, 0.25
      %v1404 = vmul.f32 %v987, 0.25
      %v1405 = vmul.f32 %v1085, 0.25
      %v1406 = vmul.f32 %v990, 0.25
      %v1407 = vmul.f32 %v1086, 0.25
      %v1408 = vadd.f32 %v1087, %v1344
      %v1409 = vadd.f32 %v1088, %v1345
      %v1410 = vadd.f32 %v1089, %v1346
      %v1411 = vadd.f32 %v1090, %v1347
      %v1412 = vadd.f32 %v1091, %v1348
      %v1413 = vadd.f32 %v1092, %v1349
      %v1414 = vadd.f32 %v1093, %v1350
      %v1415 = vadd.f32 %v1094, %v1351
      %v1416 = vadd.f32 %v1095, %v1352
      %v1417 = vadd.f32 %v1096, %v1353
      %v1418 = vadd.f32 %v1097, %v1354
      %v1419 = vadd.f32 %v1098, %v1355
      %v1420 = vadd.f32 %v1099, %v1356
      %v1421 = vadd.f32 %v1100, %v1357
      %v1422 = vadd.f32 %v1101, %v1358
      %v1423 = vadd.f32 %v1102, %v1359
      %v1424 = vadd.f32 %v1103, %v1360
      %v1425 = vadd.f32 %v1104, %v1361
      %v1426 = vadd.f32 %v1105, %v1362
      %v1427 = vadd.f32 %v1106, %v1363
      %v1428 = vadd.f32 %v1107, %v1364
      %v1429 = vadd.f32 %v1108, %v1365
      %v1430 = vadd.f32 %v1109, %v1366
      %v1431 = vadd.f32 %v1110, %v1367
      %v1432 = vadd.f32 %v1111, %v1368
      %v1433 = vadd.f32 %v1112, %v1369
      %v1434 = vadd.f32 %v1113, %v1370
      %v1435 = vadd.f32 %v1114, %v1371
      %v1436 = vadd.f32 %v1115, %v1372
      %v1437 = vadd.f32 %v1116, %v1373
      %v1438 = vadd.f32 %v1117, %v1374
      %v1439 = vadd.f32 %v1118, %v1375
      %v1440 = vadd.f32 %v1119, %v1376
      %v1441 = vadd.f32 %v1120, %v1377
      %v1442 = vadd.f32 %v1121, %v1378
      %v1443 = vadd.f32 %v1122, %v1379
      %v1444 = vadd.f32 %v1123, %v1380
      %v1445 = vadd.f32 %v1124, %v1381
      %v1446 = vadd.f32 %v1125, %v1382
      %v1447 = vadd.f32 %v1126, %v1383
      %v1448 = vadd.f32 %v1127, %v1384
      %v1449 = vadd.f32 %v1128, %v1385
      %v1450 = vadd.f32 %v1129, %v1386
      %v1451 = vadd.f32 %v1130, %v1387
      %v1452 = vadd.f32 %v1131, %v1388
      %v1453 = vadd.f32 %v1132, %v1389
      %v1454 = vadd.f32 %v1133, %v1390
      %v1455 = vadd.f32 %v1134, %v1391
      %v1456 = vadd.f32 %v1135, %v1392
      %v1457 = vadd.f32 %v1136, %v1393
      %v1458 = vadd.f32 %v1137, %v1394
      %v1459 = vadd.f32 %v1138, %v1395
      %v1460 = vadd.f32 %v1139, %v1396
      %v1461 = vadd.f32 %v1140, %v1397
      %v1462 = vadd.f32 %v1141, %v1398
      %v1463 = vadd.f32 %v1142, %v1399
      %v1464 = vadd.f32 %v1143, %v1400
      %v1465 = vadd.f32 %v1144, %v1401
      %v1466 = vadd.f32 %v1145, %v1402
      %v1467 = vadd.f32 %v1146, %v1403
      %v1468 = vadd.f32 %v1147, %v1404
      %v1469 = vadd.f32 %v1148, %v1405
      %v1470 = vadd.f32 %v1149, %v1406
      %v1471 = vadd.f32 %v1150, %v1407
      %s1472 = scalar_lea.vmem %s180, 512
      %1473 = vst.msk [vmem:[%s1472] sm:$0xff] %vm1279, %v1408
      %1474 = vst.msk [vmem:[%s1472 + $0x8] sm:$0xff] %vm1279, %v1409
      %1475 = vst.msk [vmem:[%s1472 + $0x10] sm:$0xff] %vm1279, %v1410
      %1476 = vst.msk [vmem:[%s1472 + $0x18] sm:$0xff] %vm1279, %v1411
      %1477 = vst.msk [vmem:[%s1472 + $0x20] sm:$0xff] %vm1279, %v1412
      %1478 = vst.msk [vmem:[%s1472 + $0x28] sm:$0xff] %vm1279, %v1413
      %1479 = vst.msk [vmem:[%s1472 + $0x30] sm:$0xff] %vm1279, %v1414
      %1480 = vst.msk [vmem:[%s1472 + $0x38] sm:$0xff] %vm1279, %v1415
      %1481 = vst.msk [vmem:[%s1472 + $0x40] sm:$0xff] %vm1279, %v1416
      %1482 = vst.msk [vmem:[%s1472 + $0x48] sm:$0xff] %vm1279, %v1417
      %1483 = vst.msk [vmem:[%s1472 + $0x50] sm:$0xff] %vm1279, %v1418
      %1484 = vst.msk [vmem:[%s1472 + $0x58] sm:$0xff] %vm1279, %v1419
      %1485 = vst.msk [vmem:[%s1472 + $0x60] sm:$0xff] %vm1279, %v1420
      %1486 = vst.msk [vmem:[%s1472 + $0x68] sm:$0xff] %vm1279, %v1421
      %1487 = vst.msk [vmem:[%s1472 + $0x70] sm:$0xff] %vm1279, %v1422
      %1488 = vst.msk [vmem:[%s1472 + $0x78] sm:$0xff] %vm1279, %v1423
      %1489 = vst.msk [vmem:[%s1472 + $0x80] sm:$0xff] %vm1279, %v1424
      %1490 = vst.msk [vmem:[%s1472 + $0x88] sm:$0xff] %vm1279, %v1425
      %1491 = vst.msk [vmem:[%s1472 + $0x90] sm:$0xff] %vm1279, %v1426
      %1492 = vst.msk [vmem:[%s1472 + $0x98] sm:$0xff] %vm1279, %v1427
      %1493 = vst.msk [vmem:[%s1472 + $0xa0] sm:$0xff] %vm1279, %v1428
      %1494 = vst.msk [vmem:[%s1472 + $0xa8] sm:$0xff] %vm1279, %v1429
      %1495 = vst.msk [vmem:[%s1472 + $0xb0] sm:$0xff] %vm1279, %v1430
      %1496 = vst.msk [vmem:[%s1472 + $0xb8] sm:$0xff] %vm1279, %v1431
      %1497 = vst.msk [vmem:[%s1472 + $0xc0] sm:$0xff] %vm1279, %v1432
      %1498 = vst.msk [vmem:[%s1472 + $0xc8] sm:$0xff] %vm1279, %v1433
      %1499 = vst.msk [vmem:[%s1472 + $0xd0] sm:$0xff] %vm1279, %v1434
      %1500 = vst.msk [vmem:[%s1472 + $0xd8] sm:$0xff] %vm1279, %v1435
      %1501 = vst.msk [vmem:[%s1472 + $0xe0] sm:$0xff] %vm1279, %v1436
      %1502 = vst.msk [vmem:[%s1472 + $0xe8] sm:$0xff] %vm1279, %v1437
      %1503 = vst.msk [vmem:[%s1472 + $0xf0] sm:$0xff] %vm1279, %v1438
      %1504 = vst.msk [vmem:[%s1472 + $0xf8] sm:$0xff] %vm1279, %v1439
      %1505 = vst.msk [vmem:[%s1472 + $0x100] sm:$0xff] %vm1279, %v1440
      %1506 = vst.msk [vmem:[%s1472 + $0x108] sm:$0xff] %vm1279, %v1441
      %1507 = vst.msk [vmem:[%s1472 + $0x110] sm:$0xff] %vm1279, %v1442
      %1508 = vst.msk [vmem:[%s1472 + $0x118] sm:$0xff] %vm1279, %v1443
      %1509 = vst.msk [vmem:[%s1472 + $0x120] sm:$0xff] %vm1279, %v1444
      %1510 = vst.msk [vmem:[%s1472 + $0x128] sm:$0xff] %vm1279, %v1445
      %1511 = vst.msk [vmem:[%s1472 + $0x130] sm:$0xff] %vm1279, %v1446
      %1512 = vst.msk [vmem:[%s1472 + $0x138] sm:$0xff] %vm1279, %v1447
      %1513 = vst.msk [vmem:[%s1472 + $0x140] sm:$0xff] %vm1279, %v1448
      %1514 = vst.msk [vmem:[%s1472 + $0x148] sm:$0xff] %vm1279, %v1449
      %1515 = vst.msk [vmem:[%s1472 + $0x150] sm:$0xff] %vm1279, %v1450
      %1516 = vst.msk [vmem:[%s1472 + $0x158] sm:$0xff] %vm1279, %v1451
      %1517 = vst.msk [vmem:[%s1472 + $0x160] sm:$0xff] %vm1279, %v1452
      %1518 = vst.msk [vmem:[%s1472 + $0x168] sm:$0xff] %vm1279, %v1453
      %1519 = vst.msk [vmem:[%s1472 + $0x170] sm:$0xff] %vm1279, %v1454
      %1520 = vst.msk [vmem:[%s1472 + $0x178] sm:$0xff] %vm1279, %v1455
      %1521 = vst.msk [vmem:[%s1472 + $0x180] sm:$0xff] %vm1279, %v1456
      %1522 = vst.msk [vmem:[%s1472 + $0x188] sm:$0xff] %vm1279, %v1457
      %1523 = vst.msk [vmem:[%s1472 + $0x190] sm:$0xff] %vm1279, %v1458
      %1524 = vst.msk [vmem:[%s1472 + $0x198] sm:$0xff] %vm1279, %v1459
      %1525 = vst.msk [vmem:[%s1472 + $0x1a0] sm:$0xff] %vm1279, %v1460
      %1526 = vst.msk [vmem:[%s1472 + $0x1a8] sm:$0xff] %vm1279, %v1461
      %1527 = vst.msk [vmem:[%s1472 + $0x1b0] sm:$0xff] %vm1279, %v1462
      %1528 = vst.msk [vmem:[%s1472 + $0x1b8] sm:$0xff] %vm1279, %v1463
      %1529 = vst.msk [vmem:[%s1472 + $0x1c0] sm:$0xff] %vm1279, %v1464
      %1530 = vst.msk [vmem:[%s1472 + $0x1c8] sm:$0xff] %vm1279, %v1465
      %1531 = vst.msk [vmem:[%s1472 + $0x1d0] sm:$0xff] %vm1279, %v1466
      %1532 = vst.msk [vmem:[%s1472 + $0x1d8] sm:$0xff] %vm1279, %v1467
      %1533 = vst.msk [vmem:[%s1472 + $0x1e0] sm:$0xff] %vm1279, %v1468
      %1534 = vst.msk [vmem:[%s1472 + $0x1e8] sm:$0xff] %vm1279, %v1469
      %1535 = vst.msk [vmem:[%s1472 + $0x1f0] sm:$0xff] %vm1279, %v1470
      %1536 = vst.msk [vmem:[%s1472 + $0x1f8] sm:$0xff] %vm1279, %v1471
      %p1537 = scmp.lt.s32.totalorder %s17, 1
      %s1538 = scalar_select %p1537, %s17, 1
      %p1539 = scmp.lt.s32.totalorder %s18, 0
      %s1540 = scalar_select %p1539, %s18, 0
      %s1541 = smul.addr %s1538, 128
      %s1542 = sadd.s32 %s1540, %s1541
      %s1543 = smul.addr %s1542, 8
      %s1544 = scalar_lea.vmem %s2, %s1543
      // Predicated region
      $region29: #{upsample.1} parent=27 // pred_check
        %p1545 = pneg %p97
      $region30: #{upsample.1} parent=27 // pred_check_branch
        %1547 = sbr.rel (%p1545) target = $region32
      $region31: #{upsample.1} parent=27 // pred_region
        _
      $region32: #{upsample.1} parent=27 // pred_fallthru
        _
    $region28: #{upsample.1} parent=5 // pred_fallthru
      _
    %p1548 = scmp.le.s32.totalorder 2, %s8
    // Predicated region
    $region33: #{upsample.1} parent=5 // pred_check
      %p1549 = pneg %p1548
    $region34: #{upsample.1} parent=5 // pred_check_branch
      %1551 = sbr.rel (%p1549) target = $region36
    $region35: #{upsample.1} parent=5 // pred_region
      %s1552 = ssub.s32 %s8, 2
      // Predicated region
      $region37: #{upsample.1} parent=35 // pred_check
        %p1553 = pneg %p103
      $region38: #{upsample.1} parent=35 // pred_check_branch
        %1555 = sbr.rel (%p1553) target = $region40
      $region39: #{upsample.1} parent=35 // pred_region
        %p1556 = scmp.lt.s32.totalorder %s19, 1
        %s1557 = scalar_select %p1556, %s19, 1
        %p1558 = scmp.lt.s32.totalorder %s20, 0
        %s1559 = scalar_select %p1558, %s20, 0
        %s1560 = smul.addr %s1557, 128
        %s1561 = sadd.s32 %s1559, %s1560
        %s1562 = smul.addr %s1561, 8
        %s1563 = scalar_lea.vmem %s2, %s1562
      $region40: #{upsample.1} parent=35 // pred_fallthru
        _
    $region36: #{upsample.1} parent=5 // pred_fallthru
      _
  $region6: #{upsample.1} parent=0 // loop_footer
    %s12 = sadd.s32 1, %s8
  $region7: #{upsample.1} parent=0 // loop_footer_branch
    %7 = sbr.rel target = $region3
  $region8: #{upsample.1} parent=0 // loop_exit
    _

</llo_original>
